<compile_context>
chip_gen: v6e
topology: v6e:2x2x1
jax: 0.10.0
libtpu: 0.0.40
codegen_flags: <defaults>
</compile_context>

<pallas_src>
from typing import NamedTuple

import jax
import jax.numpy as jnp
from jax.experimental import pallas as pl
from jax.experimental.pallas import tpu as pltpu


# ----------------------------- helpers --------------------------------------


def _round_up(x, m):
    return (x + m - 1) // m * m


def _pick_tile(total, quantum, limit):
    """Largest multiple of `quantum` that divides `total` and is <= limit."""
    limit = max(quantum, min(limit, total))
    for k in range(limit // quantum, 0, -1):
        if total % (k * quantum) == 0:
            return k * quantum
    return quantum


def _vmem_budget_bytes():
    """Generation-aware VMEM working-set budget (bytes) and physical capacity."""
    phys = None
    try:
        phys = getattr(pltpu.get_tpu_info(), "vmem_capacity_bytes", None)
    except Exception:
        phys = None
    if not phys:
        phys = 64 << 20          # conservative default (v7x per-TC VMEM)
    phys = max(int(phys), 48 << 20)
    # Never request all of physical VMEM: leave headroom for compiler scratch,
    # semaphores and pipelining; cap at ~100 MiB on the 128 MiB (v5e/v6e) parts.
    budget = max(min(phys - (16 << 20), 100 << 20), 24 << 20)
    return budget, phys


# ----------------------------- kernel ---------------------------------------


def _make_kernel(n_inputs, compute_dtype):
    """Kernel: average n activation tiles, project with the weight tile, add bias."""
    inv_n = 1.0 / float(n_inputs)

    def kernel(*refs):
        # refs = (x_0 .. x_{n-1} [tm, D], w [D, tv], b [1, tv], out [tm, tv])
        x_refs = refs[:n_inputs]
        w_ref, b_ref, o_ref = refs[n_inputs:]
        if n_inputs == 1:
            x = x_refs[0][...].astype(compute_dtype)
        else:
            # Fused decoder-output average (f32 sum, then cast to compute dtype).
            s = x_refs[0][...].astype(jnp.float32)
            for r in x_refs[1:]:
                s = s + r[...].astype(jnp.float32)
            x = (s * inv_n).astype(compute_dtype)
        acc = jnp.dot(x, w_ref[...], preferred_element_type=jnp.float32)  # [tm, tv]
        o_ref[...] = (acc + b_ref[...].astype(jnp.float32)).astype(o_ref.dtype)

    return kernel


# ------------------------- one-time weight prep ------------------------------


class PreparedProjection(NamedTuple):
    w_t: jax.Array      # [D, Vp]  pre-transposed, vocab padded to multiple of 128
    bias: jax.Array     # [1, Vp]  float32
    vocab_size: int     # original (unpadded) V


def prepare_output_projection(w, b, *, weight_dtype=None):
    """One-time projection-weight preparation (call at model-load, NOT per step).

    Transposes W ([V, D] -> [D, Vp]) so the kernel contraction is MXU-natural,
    pads the vocab dim to a multiple of 128, and optionally stores the weight
    in a narrower dtype (e.g. bf16) to halve its HBM stream.
    """
    V, D = w.shape
    Vp = _round_up(V, 128)
    w_t = jnp.swapaxes(w, 0, 1)                       # [D, V]
    b2 = b.reshape(1, V).astype(jnp.float32)
    if Vp != V:
        w_t = jnp.pad(w_t, ((0, 0), (0, Vp - V)))
        b2 = jnp.pad(b2, ((0, 0), (0, Vp - V)))
    if weight_dtype is not None:
        w_t = w_t.astype(weight_dtype)
    return PreparedProjection(w_t=w_t, bias=b2, vocab_size=V)


# ------------------------------ forward --------------------------------------


def unprojected_strategy_forward(unprojected_outs, proj, *,
                                 select_single=None,
                                 tile_m=512, tile_v=None):
    """Pallas implementation of UnprojectedStrategy.forward.

    Args:
      unprojected_outs: list of [B, S, D] arrays (same shape/dtype each).
      proj: PreparedProjection from prepare_output_projection (one-time prep).
      select_single: if not None, use only that decoder output (no average).

    Returns:
      (logits [B, S, V], possible_translation_tokens=None)
    """
    if select_single is not None:
        xs = [unprojected_outs[select_single]]
    else:
        xs = list(unprojected_outs)
    n = len(xs)

    B, S, D = xs[0].shape
    out_dtype = xs[0].dtype
    M = B * S

    w_t, bias, V = proj.w_t, proj.bias, proj.vocab_size
    Dw, Vp = w_t.shape
    assert Dw == D, "out_embed_dim mismatch between activations and projection"

    xs2 = [x.reshape(M, D) for x in xs]
    Mp = _round_up(M, 8)
    if Mp != M:   # rare; pads only the cheap [M, D] operand, never the weight
        xs2 = [jnp.pad(x, ((0, Mp - M), (0, 0))) for x in xs2]

    x_bytes = jnp.dtype(xs[0].dtype).itemsize
    w_bytes = jnp.dtype(w_t.dtype).itemsize
    o_bytes = jnp.dtype(out_dtype).itemsize

    budget, phys = _vmem_budget_bytes()

    # Generation-aware tile targets: as wide as the VMEM budget allows.
    if tile_v is None:
        tile_v = 1024 if budget >= (56 << 20) else 512
        if D <= 512 and budget >= (80 << 20):
            tile_v = 2048

    tm = _pick_tile(Mp, 8, tile_m)
    tv = _pick_tile(Vp, 128, tile_v)

    def working_set(tm_, tv_):
        # double-buffered activation / weight / bias / output tiles
        return 2 * (n * tm_ * D * x_bytes + D * tv_ * w_bytes
                    + tm_ * tv_ * o_bytes + tv_ * 4)

    # Shrink tiles until the double-buffered working set fits the budget.
    while working_set(tm, tv) > budget and (tm > 8 or tv > 128):
        if tv > 128 and (D * tv * w_bytes >= n * tm * D * x_bytes or tm <= 8):
            tv = _pick_tile(Vp, 128, tv // 2)
        else:
            tm = _pick_tile(Mp, 8, tm // 2)

    grid_m, grid_v = Mp // tm, Vp // tv
    grid = (grid_m, grid_v)   # vocab innermost: x tiles stay resident, W streams

    # Run the MXU in the weight's dtype when it is narrower (e.g. bf16 weights).
    compute_dtype = (w_t.dtype
                     if jnp.dtype(w_t.dtype).itemsize <= jnp.dtype(xs[0].dtype).itemsize
                     else xs[0].dtype)

    cost = pl.CostEstimate(
        flops=2 * Mp * D * Vp + n * Mp * D,
        transcendentals=0,
        bytes_accessed=(n * Mp * D * x_bytes          # activations (once per M tile)
                        + grid_m * Vp * D * w_bytes   # W re-streamed once per M tile
                        + grid_m * Vp * 4             # bias tiles
                        + Mp * Vp * o_bytes),         # logits
    )

    vmem_limit = int(min(max(2 * working_set(tm, tv) + (4 << 20), 32 << 20),
                         phys - (8 << 20)))

    in_specs = ([pl.BlockSpec((tm, D), lambda i, j: (i, 0))] * n   # shared x spec
                + [pl.BlockSpec((D, tv), lambda i, j: (0, j)),     # pre-transposed W
                   pl.BlockSpec((1, tv), lambda i, j: (0, j))])    # bias tile

    logits_flat = pl.pallas_call(
        _make_kernel(n, compute_dtype),
        out_shape=jax.ShapeDtypeStruct((Mp, Vp), out_dtype),
        grid_spec=pltpu.PrefetchScalarGridSpec(
            num_scalar_prefetch=0,
            grid=grid,
            in_specs=in_specs,
            out_specs=pl.BlockSpec((tm, tv), lambda i, j: (i, j)),
        ),
        compiler_params=pltpu.CompilerParams(
            # Kernel is stateless across the grid -> both axes shardable across
            # TensorCores on v7x (vocab split halves per-TC weight traffic;
            # axis choice is left to the compiler).
            dimension_semantics=("parallel", "parallel"),
            vmem_limit_bytes=vmem_limit,
        ),
        cost_estimate=cost,
    )(*xs2, w_t, bias)

    if Mp != M or Vp != V:   # only when shapes are not tile-aligned
        logits_flat = logits_flat[:M, :V]
    logits = logits_flat.reshape(B, S, V)

    # TODO(synk): vocab_reduction_module path (projection onto a reduced vocab
    # gathered from possible_translation_tokens) is not implemented.
    return logits, None


# ------------------------------ demo / test -----------------------------------


if __name__ == "__main__":
    key = jax.random.PRNGKey(0)

    # Small shapes consistent with the module's forward.
    B, S, D, V = 2, 8, 32, 256          # batch, seq, out_embed_dim, vocab_size
    n_decoders = 2

    keys = jax.random.split(key, n_decoders + 2)
    unprojected_outs = [
        jax.random.normal(keys[i], (B, S, D), dtype=jnp.float32)
        for i in range(n_decoders)
    ]
    # OutputProjection params: weight [vocab_size, out_embed_dim], bias [vocab_size]
    w = 0.02 * jax.random.normal(keys[-2], (V, D), dtype=jnp.float32)
    b = 0.01 * jax.random.normal(keys[-1], (V,), dtype=jnp.float32)

    def reference(outs, select_single=None):
        if select_single is not None:
            x = outs[select_single]
        else:
            x = jnp.mean(jnp.stack(outs, axis=0), axis=0)
        return jnp.einsum("bsd,vd->bsv", x, w) + b[None, None, :]

    # One-time weight prep (model-load time; outside the per-step hot path).
    proj_f32 = prepare_output_projection(w, b)

    # 1) averaged path (f32 weights)
    logits, ptt = unprojected_strategy_forward(unprojected_outs, proj_f32)
    logits = jax.block_until_ready(logits)
    assert logits.shape == (B, S, V)
    assert ptt is None
    assert jnp.allclose(logits, reference(unprojected_outs),
                        atol=1e-4, rtol=1e-4), "mismatch vs reference (avg path)"

    # 2) select_single path (no averaging, single decoder output)
    logits1, _ = unprojected_strategy_forward(unprojected_outs, proj_f32,
                                              select_single=1)
    logits1 = jax.block_until_ready(logits1)
    assert jnp.allclose(logits1, reference(unprojected_outs, select_single=1),
                        atol=1e-4, rtol=1e-4), "mismatch vs reference (single path)"

    # 3) bf16-stored weights (halves the dominant W HBM stream; f32 accumulation)
    proj_bf16 = prepare_output_projection(w, b, weight_dtype=jnp.bfloat16)
    logits_bf16, _ = unprojected_strategy_forward(unprojected_outs, proj_bf16)
    logits_bf16 = jax.block_until_ready(logits_bf16)
    x_avg_bf16 = jnp.mean(jnp.stack(unprojected_outs, 0), 0).astype(jnp.bfloat16)
    ref_bf16 = (jnp.einsum("bsd,vd->bsv",
                           x_avg_bf16.astype(jnp.float32),
                           w.astype(jnp.bfloat16).astype(jnp.float32))
                + b[None, None, :])
    assert jnp.allclose(logits_bf16, ref_bf16,
                        atol=2e-3, rtol=2e-3), "mismatch vs reference (bf16 path)"

    print("KERNEL_OK")
</pallas_src>

<mosaic_0001>
module attributes {stable_mosaic.version = 11 : i64} {
  func.func @kernel(%arg0: i32, %arg1: i32, %arg2: memref<16x32xf32, #tpu.memory_space<vmem>>, %arg3: memref<16x32xf32, #tpu.memory_space<vmem>>, %arg4: memref<32x256xf32, #tpu.memory_space<vmem>>, %arg5: memref<1x256xf32, #tpu.memory_space<vmem>>, %arg6: memref<16x256xf32, #tpu.memory_space<vmem>>) attributes {dimension_semantics = [#tpu.dimension_semantics<parallel>, #tpu.dimension_semantics<parallel>], iteration_bounds = array<i64: 1, 1>, scalar_prefetch = 0 : i64, scratch_operands = 0 : i64, tpu.core_type = #tpu.core_type<tc>, window_params = [{transform_indices = @transform_0, window_bounds = array<i64: 16, 32>}, {transform_indices = @transform_1, window_bounds = array<i64: 16, 32>}, {transform_indices = @transform_2, window_bounds = array<i64: 32, 256>}, {transform_indices = @transform_3, window_bounds = array<i64: 1, 256>}, {transform_indices = @transform_4, window_bounds = array<i64: 16, 256>}]} {
    %c0 = arith.constant 0 : index
    %c0_0 = arith.constant 0 : index
    %0 = vector.load %arg2[%c0, %c0_0] : memref<16x32xf32, #tpu.memory_space<vmem>>, vector<16x32xf32>
    %c0_1 = arith.constant 0 : index
    %c0_2 = arith.constant 0 : index
    %1 = vector.load %arg3[%c0_1, %c0_2] : memref<16x32xf32, #tpu.memory_space<vmem>>, vector<16x32xf32>
    %2 = arith.addf %0, %1 : vector<16x32xf32>
    %cst = arith.constant 5.000000e-01 : f32
    %3 = vector.broadcast %cst : f32 to vector<16x32xf32>
    %4 = arith.mulf %2, %3 : vector<16x32xf32>
    %c0_3 = arith.constant 0 : index
    %c0_4 = arith.constant 0 : index
    %5 = vector.load %arg4[%c0_3, %c0_4] : memref<32x256xf32, #tpu.memory_space<vmem>>, vector<32x256xf32>
    %cst_5 = arith.constant dense<0.000000e+00> : vector<16x256xf32>
    %6 = tpu.matmul %4, %5, %cst_5 {dimension_numbers = #tpu.dot_dimension_numbers<[1], [0], [0], [1], [0, 0, 1, 1], [], []>} : vector<16x32xf32>, vector<32x256xf32>, vector<16x256xf32> -> vector<16x256xf32>
    %c0_6 = arith.constant 0 : index
    %c0_7 = arith.constant 0 : index
    %7 = vector.load %arg5[%c0_6, %c0_7] : memref<1x256xf32, #tpu.memory_space<vmem>>, vector<1x256xf32>
    %8 = vector.broadcast %7 : vector<1x256xf32> to vector<16x256xf32>
    %9 = arith.addf %6, %8 : vector<16x256xf32>
    %c0_8 = arith.constant 0 : index
    %c0_9 = arith.constant 0 : index
    %10 = vector.load %arg6[%c0_8, %c0_9] : memref<16x256xf32, #tpu.memory_space<vmem>>, vector<16x256xf32>
    tpu.vector_store %arg6[%c0_8, %c0_9], %9 {strides = array<i32>} : memref<16x256xf32, #tpu.memory_space<vmem>>, vector<16x256xf32>,
    return
  }
  func.func @transform_0(%arg0: i32, %arg1: i32) -> (i32, i32) {
    %c0_i32 = arith.constant 0 : i32
    %c0_i32_0 = arith.constant 0 : i32
    return %arg0, %c0_i32 : i32, i32
  }
  func.func @transform_1(%arg0: i32, %arg1: i32) -> (i32, i32) {
    %c0_i32 = arith.constant 0 : i32
    %c0_i32_0 = arith.constant 0 : i32
    return %arg0, %c0_i32 : i32, i32
  }
  func.func @transform_2(%arg0: i32, %arg1: i32) -> (i32, i32) {
    %c0_i32 = arith.constant 0 : i32
    %c0_i32_0 = arith.constant 0 : i32
    return %c0_i32, %arg1 : i32, i32
  }
  func.func @transform_3(%arg0: i32, %arg1: i32) -> (i32, i32) {
    %c0_i32 = arith.constant 0 : i32
    %c0_i32_0 = arith.constant 0 : i32
    return %c0_i32, %arg1 : i32, i32
  }
  func.func @transform_4(%arg0: i32, %arg1: i32) -> (i32, i32) {
    %c0_i32 = arith.constant 0 : i32
    return %arg0, %arg1 : i32, i32
  }
}

</mosaic_0001>

<llo_original>
// kernel: tpu_custom_call.1
$region0: #{tpu_custom_call.1}
  #allocation0 [shape = 'u32[]', space=smem, size = 0x4, offset = 0x4, fixed_abs, tag = 'smem constant byte address 0x4 - core index']
  #allocation1 [shape = 'u32[144,128]{1,0:T(1,128)}', space=vmem, size = 0x12000, scoped, tag = 'internal scratch']
  %s0 = inlined_call_operand.hbm [shape: f32[16,32], index: 0, kind: input, shape index: {}]
  %s1 = inlined_call_operand.hbm [shape: f32[16,32], index: 1, kind: input, shape index: {}]
  %s2 = inlined_call_operand.hbm [shape: f32[32,256], index: 2, kind: input, shape index: {}]
  %s3 = inlined_call_operand.vmem [shape: f32[1,256], index: 3, kind: input, shape index: {}]
  %s4 = inlined_call_operand.hbm [shape: f32[16,256], index: 4, kind: output, shape index: {}]
  %s5 = sld [smem:[#allocation0]]
  $region38: #{tpu_custom_call.1} parent=0
    _
  %s7 = ssub.s32 1, %s5
  %s8 = scalar_select 0, %s7, %s5
  $region1: #{tpu_custom_call.1} parent=0
    #allocation2 [shape = 'u8[8192]{0}', space=vmem, size = 0x2000, scoped, tag = 'input window, operand 0, single buffered']
    #allocation3 [shape = 's32[1]{0}', space=sflag, size = 0x4, scoped, tag = 'scoped memory for tpu_custom_call.1']
    #allocation4 [shape = 's32[1]{0}', space=sflag, size = 0x4, scoped, tag = 'scoped memory for tpu_custom_call.1']
    #allocation5 [shape = 'u8[8192]{0}', space=vmem, size = 0x2000, scoped, tag = 'input window, operand 1, single buffered']
    #allocation6 [shape = 's32[1]{0}', space=sflag, size = 0x4, scoped, tag = 'scoped memory for tpu_custom_call.1']
    #allocation7 [shape = 'u8[32768]{0}', space=vmem, size = 0x8000, scoped, tag = 'input window, operand 2, single buffered']
    #allocation8 [shape = 'u8[16384]{0}', space=vmem, size = 0x4000, scoped, tag = 'output window, operand 0, single buffered']
    %9 = vsyncpa [#allocation3], 0
    %10 = vsyncpa [#allocation6], 0
    %11 = vsyncpa [#allocation4], 0
    // Predicated region
    $region2: #{tpu_custom_call.1} parent=1 // pred_check
      _
    $region3: #{tpu_custom_call.1} parent=1 // pred_check_branch
      %13 = sbr.rel (0) target = $region5
    $region4: #{tpu_custom_call.1} parent=1 // pred_region
      %s15 = ssub.s32 256, 256
      %16 = vsyncadd [#allocation3], %s15
      %s17 = sshll.u32 [#allocation2], 4
      %s18 = int_to_ptr.vmem [resolvable:$true] %s17
      %23 = dma.hbm_to_vmem [thread:$0]  %s0, 256, %s18, [#allocation3], 128, 128, 8
    $region5: #{tpu_custom_call.1} parent=1 // pred_fallthru
      _
    // Predicated region
    $region6: #{tpu_custom_call.1} parent=1 // pred_check
      _
    $region7: #{tpu_custom_call.1} parent=1 // pred_check_branch
      %25 = sbr.rel (0) target = $region9
    $region8: #{tpu_custom_call.1} parent=1 // pred_region
      %s27 = ssub.s32 256, 256
      %28 = vsyncadd [#allocation6], %s27
      %s29 = sshll.u32 [#allocation5], 4
      %s30 = int_to_ptr.vmem [resolvable:$true] %s29
      %35 = dma.hbm_to_vmem [thread:$0]  %s1, 256, %s30, [#allocation6], 128, 128, 8
    $region9: #{tpu_custom_call.1} parent=1 // pred_fallthru
      _
    // Predicated region
    $region10: #{tpu_custom_call.1} parent=1 // pred_check
      _
    $region11: #{tpu_custom_call.1} parent=1 // pred_check_branch
      %37 = sbr.rel (0) target = $region13
    $region12: #{tpu_custom_call.1} parent=1 // pred_region
      %s39 = ssub.s32 1024, 1024
      %40 = vsyncadd [#allocation6], %s39
      %s41 = sshll.u32 [#allocation7], 4
      %s42 = int_to_ptr.vmem [resolvable:$true] %s41
      %47 = dma.hbm_to_vmem [thread:$0]  %s2, 1024, %s42, [#allocation6], 256, 256, 16
    $region13: #{tpu_custom_call.1} parent=1 // pred_fallthru
      _
    // Predicated region
    $region14: #{tpu_custom_call.1} parent=1 // pred_check
      _
    $region15: #{tpu_custom_call.1} parent=1 // pred_check_branch
      %49 = sbr.rel (0) target = $region17
    $region16: #{tpu_custom_call.1} parent=1 // pred_region
      _
    $region17: #{tpu_custom_call.1} parent=1 // pred_fallthru
      _
    // Predicated region
    $region18: #{tpu_custom_call.1} parent=1 // pred_check
      _
    $region19: #{tpu_custom_call.1} parent=1 // pred_check_branch
      %51 = sbr.rel (0) target = $region21
    $region20: #{tpu_custom_call.1} parent=1 // pred_region
      %52 = dma.done [#allocation3], 256
    $region21: #{tpu_custom_call.1} parent=1 // pred_fallthru
      _
    // Predicated region
    $region22: #{tpu_custom_call.1} parent=1 // pred_check
      _
    $region23: #{tpu_custom_call.1} parent=1 // pred_check_branch
      %54 = sbr.rel (0) target = $region25
    $region24: #{tpu_custom_call.1} parent=1 // pred_region
      %55 = dma.done [#allocation6], 256
    $region25: #{tpu_custom_call.1} parent=1 // pred_fallthru
      _
    // Predicated region
    $region26: #{tpu_custom_call.1} parent=1 // pred_check
      _
    $region27: #{tpu_custom_call.1} parent=1 // pred_check_branch
      %57 = sbr.rel (0) target = $region29
    $region28: #{tpu_custom_call.1} parent=1 // pred_region
      %58 = dma.done [#allocation6], 1024
    $region29: #{tpu_custom_call.1} parent=1 // pred_fallthru
      _
    %v59 = vld [vmem:[#allocation2] sm:$0xff]
    %v60 = vld [vmem:[#allocation2 + $0x8] sm:$0xff]
    %v61 = vld [vmem:[#allocation5] sm:$0xff]
    %v62 = vld [vmem:[#allocation5 + $0x8] sm:$0xff]
    %v63 = vadd.f32 %v59, %v61
    %v64 = vadd.f32 %v60, %v62
    %v65 = vmul.f32 %v63, 0.5
    %v66 = vmul.f32 %v64, 0.5
    %v67 = vld [vmem:[#allocation7] sm:$0xff]
    %v68 = vld [vmem:[#allocation7 + $0x8] sm:$0xff]
    %v69 = vld [vmem:[#allocation7 + $0x10] sm:$0xff]
    %v70 = vld [vmem:[#allocation7 + $0x18] sm:$0xff]
    %v71 = vld [vmem:[#allocation7 + $0x20] sm:$0xff]
    %v72 = vld [vmem:[#allocation7 + $0x28] sm:$0xff]
    %v73 = vld [vmem:[#allocation7 + $0x30] sm:$0xff]
    %v74 = vld [vmem:[#allocation7 + $0x38] sm:$0xff]
    %v75 = vld [vmem:[%s3] sm:$0x3]
    %v77 = vlaneseq
    %v78 = vshrl.u32 %v77, 7
    %v79 = vsub.s32 0, %v78
    %v80 = vrot.slane %v75, %v79
    %v81 = vlaneseq
    %v82 = vshrl.u32 %v81, 7
    %v83 = vsub.s32 1, %v82
    %v84 = vrot.slane %v75, %v83
    %vm87 = vcmask 261120
    %v89 = vsel %vm87, %v65, 0
    %v92 = vsel %vm87, %v66, 0
    %94 = vmatprep.subr.mxu0 0.0
    %95 = vmatpush1.msra.mxu0 0.0
    %96 = vmatprep.subr.mxu0 0.0
    %97 = vmatpush1.msra.mxu0 0.0
    %98 = vmatprep.subr.mxu0 0.0
    %99 = vmatpush1.msra.mxu0 0.0
    %100 = vmatprep.subr.mxu0 0.0
    %101 = vmatpush1.msra.mxu0 0.0
    %102 = vmatprep.subr.mxu0 0.0
    %103 = vmatpush1.msra.mxu0 0.0
    %104 = vmatprep.subr.mxu0 0.0
    %105 = vmatpush1.msra.mxu0 0.0
    %106 = vmatprep.subr.mxu0 0.0
    %107 = vmatpush1.msra.mxu0 0.0
    %108 = vmatprep.subr.mxu0 0.0
    %109 = vmatpush1.msra.mxu0 0.0
    %110 = vmatprep.subr.mxu0 0.0
    %111 = vmatpush1.msra.mxu0 0.0
    %112 = vmatprep.subr.mxu0 0.0
    %113 = vmatpush1.msra.mxu0 0.0
    %114 = vmatprep.subr.mxu0 0.0
    %115 = vmatpush1.msra.mxu0 0.0
    %116 = vmatprep.subr.mxu0 0.0
    %117 = vmatpush1.msra.mxu0 0.0
    %118 = vmatprep.subr.mxu0 %v74
    %119 = vmatpush1.msra.mxu0 %v73
    %120 = vmatprep.subr.mxu0 %v72
    %121 = vmatpush1.msra.mxu0 %v71
    %122 = vmatprep.subr.mxu0 %v70
    %123 = vmatpush1.msra.mxu0 %v69
    %124 = vmatprep.subr.mxu0 %v68
    %125 = vmatpush1.msra.mxu0 %v67
    %126 = vmatprep.subr.mxu0 0.0
    %127 = vmatpush2.msra.mxu0 0.0
    %128 = vmatprep.subr.mxu0 0.0
    %129 = vmatpush2.msra.mxu0 0.0
    %130 = vmatprep.subr.mxu0 0.0
    %131 = vmatpush2.msra.mxu0 0.0
    %132 = vmatprep.subr.mxu0 0.0
    %133 = vmatpush2.msra.mxu0 0.0
    %134 = vmatprep.subr.mxu0 0.0
    %135 = vmatpush2.msra.mxu0 0.0
    %136 = vmatprep.subr.mxu0 0.0
    %137 = vmatpush2.msra.mxu0 0.0
    %138 = vmatprep.subr.mxu0 0.0
    %139 = vmatpush2.msra.mxu0 0.0
    %140 = vmatprep.subr.mxu0 0.0
    %141 = vmatpush2.msra.mxu0 0.0
    %142 = vmatprep.subr.mxu0 0.0
    %143 = vmatpush2.msra.mxu0 0.0
    %144 = vmatprep.subr.mxu0 0.0
    %145 = vmatpush2.msra.mxu0 0.0
    %146 = vmatprep.subr.mxu0 0.0
    %147 = vmatpush2.msra.mxu0 0.0
    %148 = vmatprep.subr.mxu0 0.0
    %149 = vmatpush2.msra.mxu0 0.0
    %150 = vmatprep.subr.mxu0 0.0
    %151 = vmatpush2.msra.mxu0 0.0
    %152 = vmatprep.subr.mxu0 0.0
    %153 = vmatpush2.msra.mxu0 0.0
    %154 = vmatprep.subr.mxu0 0.0
    %155 = vmatpush2.msra.mxu0 0.0
    %156 = vmatprep.subr.mxu0 0.0
    %157 = vmatpush2.msra.mxu0 0.0
    %158 = vmatprep.mubr.f32.mxu0 0.0
    %159 = vmatmul.mubr.f32.gmra.mxu0 %v89
    %v160 = vpop.f32.mrf.mxu0
    %v161 = vadd.f32 %v80, %v160
    %v162 = vpop.f32.mrf.mxu0
    %v163 = vadd.f32 %v84, %v162
    %164 = vmatprep.mubr.f32.mxu0 0.0
    %165 = vmatmul.mubr.f32.gmra.mxu0 %v92
    %v166 = vpop.f32.mrf.mxu0
    %v167 = vadd.f32 %v80, %v166
    %v168 = vpop.f32.mrf.mxu0
    %v169 = vadd.f32 %v84, %v168
    %170 = vdwg.mxu0
    %171 = vst [vmem:[#allocation8] sm:$0xff] %v161
    %172 = vst [vmem:[#allocation8 + $0x8] sm:$0xff] %v163
    %173 = vst [vmem:[#allocation8 + $0x10] sm:$0xff] %v167
    %174 = vst [vmem:[#allocation8 + $0x18] sm:$0xff] %v169
    // Predicated region
    $region30: #{tpu_custom_call.1} parent=1 // pred_check
      _
    $region31: #{tpu_custom_call.1} parent=1 // pred_check_branch
      %176 = sbr.rel (0) target = $region33
    $region32: #{tpu_custom_call.1} parent=1 // pred_region
      %s178 = ssub.s32 512, 512
      %179 = vsyncadd [#allocation4], %s178
      %s180 = sshll.u32 [#allocation8], 4
      %s181 = int_to_ptr.vmem [resolvable:$true] %s180
      %186 = dma.vmem_to_hbm [thread:$0]  %s181, 512, %s4, [#allocation4], 256, 256, 16
    $region33: #{tpu_custom_call.1} parent=1 // pred_fallthru
      _
    // Predicated region
    $region34: #{tpu_custom_call.1} parent=1 // pred_check
      _
    $region35: #{tpu_custom_call.1} parent=1 // pred_check_branch
      %188 = sbr.rel (0) target = $region37
    $region36: #{tpu_custom_call.1} parent=1 // pred_region
      %189 = dma.done [#allocation4], 512
    $region37: #{tpu_custom_call.1} parent=1 // pred_fallthru
      _
    %190 = vsyncpa [#allocation3], 1
    %191 = vsyncpa [#allocation6], 1
    %192 = vsyncpa [#allocation4], 1

</llo_original>
